<compile_context>
chip_gen: v6e
topology: v6e:2x2x1
jax: 0.10.0
libtpu: 0.0.40
codegen_flags: <defaults>
</compile_context>

<pallas_src>
import functools

import jax
import jax.numpy as jnp
from jax.experimental import pallas as pl
from jax.experimental.pallas import tpu as pltpu


def _mlp_kernel(x_ref, w1_ref, b1_ref, w2_ref, b2_ref, w3_ref, b3_ref, o_ref):
    # Layer 1: Linear (bf16 MXU, f32 accumulate) + bias + ReLU in f32.
    x = x_ref[...].astype(jnp.bfloat16)
    h = jnp.dot(x, w1_ref[...], preferred_element_type=jnp.float32)
    h = jnp.maximum(h + b1_ref[...], 0.0)
    # Layer 2: Linear + bias + ReLU.
    h = jnp.dot(h.astype(jnp.bfloat16), w2_ref[...],
                preferred_element_type=jnp.float32)
    h = jnp.maximum(h + b2_ref[...], 0.0)
    # Output layer: Linear + bias (no nonlinearity).
    out = jnp.dot(h.astype(jnp.bfloat16), w3_ref[...],
                  preferred_element_type=jnp.float32)
    out = out + b3_ref[...]
    o_ref[...] = out.astype(o_ref.dtype)


@functools.partial(jax.jit, static_argnames=("block_m",))
def mlp_forward(x, params, *, block_m=1024):
    """x: [..., in_dim] -> [..., out_dim]. Fused 3-layer MLP in one Pallas kernel.

    block_m is the main tuning knob (rows per grid step, multiple of 8).
    """
    w1, b1, w2, b2, w3, b3 = params
    in_dim = x.shape[-1]
    out_dim = w3.shape[-1]
    h1 = w1.shape[-1]
    h2 = w2.shape[-1]

    # Weights to bf16 once (tiny); biases stay f32 for the f32 epilogue.
    w1b = w1.astype(jnp.bfloat16)
    w2b = w2.astype(jnp.bfloat16)
    w3b = w3.astype(jnp.bfloat16)

    # compress_batch_dimensions(x, 2): flatten leading dims.
    batch_shape = x.shape[:-1]
    n = 1
    for d in batch_shape:
        n *= d
    x2d = x.reshape(n, in_dim)

    # Clamp the row tile to the (8-rounded) row count; keep it a multiple of 8.
    n_rounded = ((n + 7) // 8) * 8
    bm = min(block_m, n_rounded)
    bm = ((bm + 7) // 8) * 8

    grid = (pl.cdiv(n, bm),)

    out2d = pl.pallas_call(
        _mlp_kernel,
        out_shape=jax.ShapeDtypeStruct((n, out_dim), x.dtype),
        grid_spec=pltpu.PrefetchScalarGridSpec(
            num_scalar_prefetch=0,
            grid=grid,
            in_specs=[
                pl.BlockSpec((bm, in_dim), lambda i: (i, 0)),   # x rows
                pl.BlockSpec((in_dim, h1), lambda i: (0, 0)),   # w1 (bf16)
                pl.BlockSpec((1, h1), lambda i: (0, 0)),        # b1 (f32)
                pl.BlockSpec((h1, h2), lambda i: (0, 0)),       # w2 (bf16)
                pl.BlockSpec((1, h2), lambda i: (0, 0)),        # b2 (f32)
                pl.BlockSpec((h2, out_dim), lambda i: (0, 0)),  # w3 (bf16)
                pl.BlockSpec((1, out_dim), lambda i: (0, 0)),   # b3 (f32)
            ],
            out_specs=pl.BlockSpec((bm, out_dim), lambda i: (i, 0)),
        ),
        compiler_params=pltpu.CompilerParams(
            dimension_semantics=("parallel",)
        ),
    )(x2d, w1b, b1, w2b, b2, w3b, b3)

    # uncompress: restore original leading batch dims.
    return out2d.reshape(*batch_shape, out_dim)


def init_mlp_params(key, in_dim, out_dim, width, num_layers, dtype=jnp.float32):
    """Deterministic init matching nn.Linear's default U(-1/sqrt(fan_in), 1/sqrt(fan_in)).
    Weights stored as [fan_in, fan_out] (transpose of PyTorch's [out, in])."""
    assert num_layers == 2, "this script fuses exactly 2 hidden layers"
    dims = [in_dim, width, width, out_dim]
    params = []
    for li in range(3):
        key, kw, kb = jax.random.split(key, 3)
        fan_in, fan_out = dims[li], dims[li + 1]
        bound = 1.0 / jnp.sqrt(jnp.float32(fan_in))
        w = jax.random.uniform(kw, (fan_in, fan_out), dtype, -bound, bound)
        b = jax.random.uniform(kb, (1, fan_out), dtype, -bound, bound)
        params += [w, b]
    return tuple(params)


def mlp_reference_bf16(x, params):
    """Pure-JAX reference that mirrors the kernel's bf16-matmul / f32-accumulate."""
    w1, b1, w2, b2, w3, b3 = params
    shp = x.shape
    h = x.reshape(-1, shp[-1])
    h = jnp.dot(h.astype(jnp.bfloat16), w1.astype(jnp.bfloat16),
                preferred_element_type=jnp.float32)
    h = jnp.maximum(h + b1, 0.0)
    h = jnp.dot(h.astype(jnp.bfloat16), w2.astype(jnp.bfloat16),
                preferred_element_type=jnp.float32)
    h = jnp.maximum(h + b2, 0.0)
    h = jnp.dot(h.astype(jnp.bfloat16), w3.astype(jnp.bfloat16),
                preferred_element_type=jnp.float32)
    h = h + b3
    return h.reshape(*shp[:-1], w3.shape[-1])


def mlp_reference_f32(x, params):
    """Full-f32 reference (matches the PyTorch module's numerics)."""
    w1, b1, w2, b2, w3, b3 = params
    shp = x.shape
    h = x.reshape(-1, shp[-1])
    h = jnp.maximum(h @ w1 + b1, 0.0)
    h = jnp.maximum(h @ w2 + b2, 0.0)
    h = h @ w3 + b3
    return h.reshape(*shp[:-1], w3.shape[-1])


if __name__ == "__main__":
    # Module config: MLP(in_dim=16, out_dim=8, num_layers=2, width=32)
    in_dim, out_dim, width, num_layers = 16, 8, 32, 2
    batch, seq = 2, 8  # x: [batch, seq, in_dim] -> compressed to [batch*seq, in_dim]

    key = jax.random.PRNGKey(0)
    kx, kp = jax.random.split(key)
    x = jax.random.normal(kx, (batch, seq, in_dim), jnp.float32)
    params = init_mlp_params(kp, in_dim, out_dim, width, num_layers)

    y = mlp_forward(x, params)
    y = jax.block_until_ready(y)

    assert y.shape == (batch, seq, out_dim), y.shape

    # Tight check against a bf16-matched reference (same cast pattern as kernel).
    y_ref_bf16 = mlp_reference_bf16(x, params)
    assert jnp.allclose(y, y_ref_bf16, atol=1e-3, rtol=1e-3), \
        "mismatch vs bf16-matched reference"

    # Loose check against the full-f32 reference (bf16 matmul changes numerics).
    y_ref_f32 = mlp_reference_f32(x, params)
    assert jnp.allclose(y, y_ref_f32, atol=3e-2, rtol=3e-2), \
        "mismatch vs f32 reference"

    print("KERNEL_OK")
</pallas_src>

<mosaic_0001>
module attributes {stable_mosaic.version = 11 : i64} {
  func.func @_mlp_kernel(%arg0: i32, %arg1: memref<16x16xf32, #tpu.memory_space<vmem>>, %arg2: memref<16x32xbf16, #tpu.memory_space<vmem>>, %arg3: memref<1x32xf32, #tpu.memory_space<vmem>>, %arg4: memref<32x32xbf16, #tpu.memory_space<vmem>>, %arg5: memref<1x32xf32, #tpu.memory_space<vmem>>, %arg6: memref<32x8xbf16, #tpu.memory_space<vmem>>, %arg7: memref<1x8xf32, #tpu.memory_space<vmem>>, %arg8: memref<16x8xf32, #tpu.memory_space<vmem>>) attributes {dimension_semantics = [#tpu.dimension_semantics<parallel>], iteration_bounds = array<i64: 1>, scalar_prefetch = 0 : i64, scratch_operands = 0 : i64, tpu.core_type = #tpu.core_type<tc>, window_params = [{transform_indices = @transform_0, window_bounds = array<i64: 16, 16>}, {pipeline_mode = #tpu.pipeline_mode<synchronous>, transform_indices = @transform_1, window_bounds = array<i64: 16, 32>}, {pipeline_mode = #tpu.pipeline_mode<synchronous>, transform_indices = @transform_2, window_bounds = array<i64: 1, 32>}, {pipeline_mode = #tpu.pipeline_mode<synchronous>, transform_indices = @transform_3, window_bounds = array<i64: 32, 32>}, {pipeline_mode = #tpu.pipeline_mode<synchronous>, transform_indices = @transform_4, window_bounds = array<i64: 1, 32>}, {pipeline_mode = #tpu.pipeline_mode<synchronous>, transform_indices = @transform_5, window_bounds = array<i64: 32, 8>}, {pipeline_mode = #tpu.pipeline_mode<synchronous>, transform_indices = @transform_6, window_bounds = array<i64: 1, 8>}, {transform_indices = @transform_7, window_bounds = array<i64: 16, 8>}]} {
    %c0 = arith.constant 0 : index
    %c0_0 = arith.constant 0 : index
    %0 = vector.load %arg1[%c0, %c0_0] : memref<16x16xf32, #tpu.memory_space<vmem>>, vector<16x16xf32>
    %1 = arith.truncf %0 : vector<16x16xf32> to vector<16x16xbf16>
    %c0_1 = arith.constant 0 : index
    %c0_2 = arith.constant 0 : index
    %2 = vector.load %arg2[%c0_1, %c0_2] : memref<16x32xbf16, #tpu.memory_space<vmem>>, vector<16x32xbf16>
    %cst = arith.constant dense<0.000000e+00> : vector<16x32xf32>
    %3 = tpu.matmul %1, %2, %cst {dimension_numbers = #tpu.dot_dimension_numbers<[1], [0], [0], [1], [0, 0, 1, 1], [], []>} : vector<16x16xbf16>, vector<16x32xbf16>, vector<16x32xf32> -> vector<16x32xf32>
    %c0_3 = arith.constant 0 : index
    %c0_4 = arith.constant 0 : index
    %4 = vector.load %arg3[%c0_3, %c0_4] : memref<1x32xf32, #tpu.memory_space<vmem>>, vector<1x32xf32>
    %5 = vector.broadcast %4 : vector<1x32xf32> to vector<16x32xf32>
    %6 = arith.addf %3, %5 : vector<16x32xf32>
    %cst_5 = arith.constant 0.000000e+00 : f32
    %7 = vector.broadcast %cst_5 : f32 to vector<16x32xf32>
    %8 = arith.maximumf %6, %7 : vector<16x32xf32>
    %9 = arith.truncf %8 : vector<16x32xf32> to vector<16x32xbf16>
    %c0_6 = arith.constant 0 : index
    %c0_7 = arith.constant 0 : index
    %10 = vector.load %arg4[%c0_6, %c0_7] : memref<32x32xbf16, #tpu.memory_space<vmem>>, vector<32x32xbf16>
    %cst_8 = arith.constant dense<0.000000e+00> : vector<16x32xf32>
    %11 = tpu.matmul %9, %10, %cst_8 {dimension_numbers = #tpu.dot_dimension_numbers<[1], [0], [0], [1], [0, 0, 1, 1], [], []>} : vector<16x32xbf16>, vector<32x32xbf16>, vector<16x32xf32> -> vector<16x32xf32>
    %c0_9 = arith.constant 0 : index
    %c0_10 = arith.constant 0 : index
    %12 = vector.load %arg5[%c0_9, %c0_10] : memref<1x32xf32, #tpu.memory_space<vmem>>, vector<1x32xf32>
    %13 = vector.broadcast %12 : vector<1x32xf32> to vector<16x32xf32>
    %14 = arith.addf %11, %13 : vector<16x32xf32>
    %cst_11 = arith.constant 0.000000e+00 : f32
    %15 = vector.broadcast %cst_11 : f32 to vector<16x32xf32>
    %16 = arith.maximumf %14, %15 : vector<16x32xf32>
    %17 = arith.truncf %16 : vector<16x32xf32> to vector<16x32xbf16>
    %c0_12 = arith.constant 0 : index
    %c0_13 = arith.constant 0 : index
    %18 = vector.load %arg6[%c0_12, %c0_13] : memref<32x8xbf16, #tpu.memory_space<vmem>>, vector<32x8xbf16>
    %cst_14 = arith.constant dense<0.000000e+00> : vector<16x8xf32>
    %19 = tpu.matmul %17, %18, %cst_14 {dimension_numbers = #tpu.dot_dimension_numbers<[1], [0], [0], [1], [0, 0, 1, 1], [], []>} : vector<16x32xbf16>, vector<32x8xbf16>, vector<16x8xf32> -> vector<16x8xf32>
    %c0_15 = arith.constant 0 : index
    %c0_16 = arith.constant 0 : index
    %20 = vector.load %arg7[%c0_15, %c0_16] : memref<1x8xf32, #tpu.memory_space<vmem>>, vector<1x8xf32>
    %21 = vector.broadcast %20 : vector<1x8xf32> to vector<16x8xf32>
    %22 = arith.addf %19, %21 : vector<16x8xf32>
    %c0_17 = arith.constant 0 : index
    %c0_18 = arith.constant 0 : index
    %23 = vector.load %arg8[%c0_17, %c0_18] : memref<16x8xf32, #tpu.memory_space<vmem>>, vector<16x8xf32>
    tpu.vector_store %arg8[%c0_17, %c0_18], %22 {strides = array<i32>} : memref<16x8xf32, #tpu.memory_space<vmem>>, vector<16x8xf32>,
    return
  }
  func.func @transform_0(%arg0: i32) -> (i32, i32) {
    %c0_i32 = arith.constant 0 : i32
    %c0_i32_0 = arith.constant 0 : i32
    return %arg0, %c0_i32 : i32, i32
  }
  func.func @transform_1(%arg0: i32) -> (i32, i32) {
    %c0_i32 = arith.constant 0 : i32
    %c0_i32_0 = arith.constant 0 : i32
    %c0_i32_1 = arith.constant 0 : i32
    return %c0_i32, %c0_i32_0 : i32, i32
  }
  func.func @transform_2(%arg0: i32) -> (i32, i32) {
    %c0_i32 = arith.constant 0 : i32
    %c0_i32_0 = arith.constant 0 : i32
    %c0_i32_1 = arith.constant 0 : i32
    return %c0_i32, %c0_i32_0 : i32, i32
  }
  func.func @transform_3(%arg0: i32) -> (i32, i32) {
    %c0_i32 = arith.constant 0 : i32
    %c0_i32_0 = arith.constant 0 : i32
    %c0_i32_1 = arith.constant 0 : i32
    return %c0_i32, %c0_i32_0 : i32, i32
  }
  func.func @transform_4(%arg0: i32) -> (i32, i32) {
    %c0_i32 = arith.constant 0 : i32
    %c0_i32_0 = arith.constant 0 : i32
    %c0_i32_1 = arith.constant 0 : i32
    return %c0_i32, %c0_i32_0 : i32, i32
  }
  func.func @transform_5(%arg0: i32) -> (i32, i32) {
    %c0_i32 = arith.constant 0 : i32
    %c0_i32_0 = arith.constant 0 : i32
    %c0_i32_1 = arith.constant 0 : i32
    return %c0_i32, %c0_i32_0 : i32, i32
  }
  func.func @transform_6(%arg0: i32) -> (i32, i32) {
    %c0_i32 = arith.constant 0 : i32
    %c0_i32_0 = arith.constant 0 : i32
    %c0_i32_1 = arith.constant 0 : i32
    return %c0_i32, %c0_i32_0 : i32, i32
  }
  func.func @transform_7(%arg0: i32) -> (i32, i32) {
    %c0_i32 = arith.constant 0 : i32
    %c0_i32_0 = arith.constant 0 : i32
    return %arg0, %c0_i32 : i32, i32
  }
}

</mosaic_0001>

<llo_original>
// kernel: mlp_forward.1
$region0: #{mlp_forward.1}
  #allocation0 [shape = 'u32[]', space=smem, size = 0x4, offset = 0x4, fixed_abs, tag = 'smem constant byte address 0x4 - core index']
  #allocation1 [shape = 'u32[144,128]{1,0:T(1,128)}', space=vmem, size = 0x12000, scoped, tag = 'internal scratch']
  %s0 = inlined_call_operand.vmem [shape: f32[16,16], index: 0, kind: input, shape index: {}]
  %s1 = inlined_call_operand.vmem [shape: bf16[16,32], index: 1, kind: input, shape index: {}]
  %s2 = inlined_call_operand.vmem [shape: f32[1,32], index: 2, kind: input, shape index: {}]
  %s3 = inlined_call_operand.vmem [shape: bf16[32,32], index: 3, kind: input, shape index: {}]
  %s4 = inlined_call_operand.vmem [shape: f32[1,32], index: 4, kind: input, shape index: {}]
  %s5 = inlined_call_operand.vmem [shape: bf16[32,8], index: 5, kind: input, shape index: {}]
  %s6 = inlined_call_operand.vmem [shape: f32[1,8], index: 6, kind: input, shape index: {}]
  %s7 = inlined_call_operand.hbm [shape: f32[16,8], index: 7, kind: output, shape index: {}]
  %s8 = sld [smem:[#allocation0]]
  $region38: #{mlp_forward.1} parent=0
    _
  %s10 = ssub.s32 1, %s8
  %s11 = scalar_select 0, %s10, %s8
  $region1: #{mlp_forward.1} parent=0
    #allocation2 [shape = 'u8[8192]{0}', space=vmem, size = 0x2000, scoped, tag = 'output window, operand 0, single buffered']
    #allocation3 [shape = 's32[1]{0}', space=sflag, size = 0x4, scoped, tag = 'scoped memory for mlp_forward.1']
    %12 = vsyncpa [#allocation3], 0
    // Predicated region
    $region2: #{mlp_forward.1} parent=1 // pred_check
      _
    $region3: #{mlp_forward.1} parent=1 // pred_check_branch
      %14 = sbr.rel (0) target = $region5
    $region4: #{mlp_forward.1} parent=1 // pred_region
      _
    $region5: #{mlp_forward.1} parent=1 // pred_fallthru
      _
    // Predicated region
    $region6: #{mlp_forward.1} parent=1 // pred_check
      _
    $region7: #{mlp_forward.1} parent=1 // pred_check_branch
      %16 = sbr.rel (0) target = $region9
    $region8: #{mlp_forward.1} parent=1 // pred_region
      _
    $region9: #{mlp_forward.1} parent=1 // pred_fallthru
      _
    // Predicated region
    $region10: #{mlp_forward.1} parent=1 // pred_check
      _
    $region11: #{mlp_forward.1} parent=1 // pred_check_branch
      %18 = sbr.rel (0) target = $region13
    $region12: #{mlp_forward.1} parent=1 // pred_region
      _
    $region13: #{mlp_forward.1} parent=1 // pred_fallthru
      _
    // Predicated region
    $region14: #{mlp_forward.1} parent=1 // pred_check
      _
    $region15: #{mlp_forward.1} parent=1 // pred_check_branch
      %20 = sbr.rel (0) target = $region17
    $region16: #{mlp_forward.1} parent=1 // pred_region
      _
    $region17: #{mlp_forward.1} parent=1 // pred_fallthru
      _
    // Predicated region
    $region18: #{mlp_forward.1} parent=1 // pred_check
      _
    $region19: #{mlp_forward.1} parent=1 // pred_check_branch
      %22 = sbr.rel (0) target = $region21
    $region20: #{mlp_forward.1} parent=1 // pred_region
      _
    $region21: #{mlp_forward.1} parent=1 // pred_fallthru
      _
    // Predicated region
    $region22: #{mlp_forward.1} parent=1 // pred_check
      _
    $region23: #{mlp_forward.1} parent=1 // pred_check_branch
      %24 = sbr.rel (0) target = $region25
    $region24: #{mlp_forward.1} parent=1 // pred_region
      _
    $region25: #{mlp_forward.1} parent=1 // pred_fallthru
      _
    // Predicated region
    $region26: #{mlp_forward.1} parent=1 // pred_check
      _
    $region27: #{mlp_forward.1} parent=1 // pred_check_branch
      %26 = sbr.rel (0) target = $region29
    $region28: #{mlp_forward.1} parent=1 // pred_region
      _
    $region29: #{mlp_forward.1} parent=1 // pred_fallthru
      _
    %v28 = vld [vmem:[%s0] sm:$0xff]
    %v29 = vld [vmem:[%s0 + $0x8] sm:$0xff]
    %v30 = vpack.c.bf16 %v29, %v28
    %v31 = vld [vmem:[%s1] sm:$0xf]
    %v32 = vld [vmem:[%s1 + $0x4] sm:$0xf]
    %v33 = vld [vmem:[%s2] sm:$0x1]
    %v35 = vlaneseq
    %v36 = vshrl.u32 %v35, 7
    %v37 = vsub.s32 0, %v36
    %v38 = vrot.slane %v33, %v37
    %v42 = vunpack.c.l.b16 %v31
    %v43 = vunpack.c.l.b16 %v32
    %v44 = vpack.c.b16 %v43, %v42
    %vm46 = vcmask 130048
    %v48 = vsel %vm46, %v30, 0
    %50 = vmatprep.subr.bf16.mxu0 0
    %51 = vmatpush1.bf16.msra.mxu0 0
    %52 = vmatprep.subr.bf16.mxu0 0
    %53 = vmatpush1.bf16.msra.mxu0 0
    %54 = vmatprep.subr.bf16.mxu0 0
    %55 = vmatpush1.bf16.msra.mxu0 0
    %56 = vmatprep.subr.bf16.mxu0 0
    %57 = vmatpush1.bf16.msra.mxu0 0
    %58 = vmatprep.subr.bf16.mxu0 0
    %59 = vmatpush1.bf16.msra.mxu0 0
    %60 = vmatprep.subr.bf16.mxu0 0
    %61 = vmatpush1.bf16.msra.mxu0 0
    %62 = vmatprep.subr.bf16.mxu0 0
    %63 = vmatpush1.bf16.msra.mxu0 0
    %64 = vmatprep.subr.bf16.mxu0 0
    %65 = vmatpush1.bf16.msra.mxu0 %v44
    %66 = vmatprep.subr.bf16.mxu0 0
    %67 = vmatpush2.bf16.msra.mxu0 0
    %68 = vmatprep.subr.bf16.mxu0 0
    %69 = vmatpush2.bf16.msra.mxu0 0
    %70 = vmatprep.subr.bf16.mxu0 0
    %71 = vmatpush2.bf16.msra.mxu0 0
    %72 = vmatprep.subr.bf16.mxu0 0
    %73 = vmatpush2.bf16.msra.mxu0 0
    %74 = vmatprep.subr.bf16.mxu0 0
    %75 = vmatpush2.bf16.msra.mxu0 0
    %76 = vmatprep.subr.bf16.mxu0 0
    %77 = vmatpush2.bf16.msra.mxu0 0
    %78 = vmatprep.subr.bf16.mxu0 0
    %79 = vmatpush2.bf16.msra.mxu0 0
    %80 = vmatprep.subr.bf16.mxu0 0
    %81 = vmatpush2.bf16.msra.mxu0 0
    %82 = vmatprep.mubr.bf16.mxu0 0
    %83 = vmatmul.mubr.bf16.gmra.mxu0 %v48
    %v84 = vpop.f32.mrf.mxu0
    %v85 = vadd.f32 %v38, %v84
    %v86 = vpop.f32.mrf.mxu0
    %v87 = vpop.f32.mrf.mxu0
    %v88 = vadd.f32 %v38, %v87
    %v89 = vpop.f32.mrf.mxu0
    %90 = vdwg.mxu0
    %v91 = vmax.f32 %v85, 0.0
    %v92 = vmax.f32 %v88, 0.0
    %v93 = vpack.c.bf16 %v92, %v91
    %v94 = vld [vmem:[%s3] sm:$0xf]
    %v95 = vld [vmem:[%s3 + $0x4] sm:$0xf]
    %v96 = vld [vmem:[%s3 + $0x8] sm:$0xf]
    %v97 = vld [vmem:[%s3 + $0xc] sm:$0xf]
    %v98 = vld [vmem:[%s4] sm:$0x1]
    %v100 = vlaneseq
    %v101 = vshrl.u32 %v100, 7
    %v102 = vsub.s32 0, %v101
    %v103 = vrot.slane %v98, %v102
    %v109 = vunpack.c.l.b16 %v94
    %v110 = vunpack.c.l.b16 %v95
    %v111 = vunpack.c.l.b16 %v96
    %v112 = vunpack.c.l.b16 %v97
    %v113 = vpack.c.b16 %v110, %v109
    %v114 = vpack.c.b16 %v112, %v111
    %vm117 = vcmask 261120
    %v119 = vsel %vm117, %v93, 0
    %121 = vmatprep.subr.bf16.mxu0 0
    %122 = vmatpush1.bf16.msra.mxu0 0
    %123 = vmatprep.subr.bf16.mxu0 0
    %124 = vmatpush1.bf16.msra.mxu0 0
    %125 = vmatprep.subr.bf16.mxu0 0
    %126 = vmatpush1.bf16.msra.mxu0 0
    %127 = vmatprep.subr.bf16.mxu0 0
    %128 = vmatpush1.bf16.msra.mxu0 0
    %129 = vmatprep.subr.bf16.mxu0 0
    %130 = vmatpush1.bf16.msra.mxu0 0
    %131 = vmatprep.subr.bf16.mxu0 0
    %132 = vmatpush1.bf16.msra.mxu0 0
    %133 = vmatprep.subr.bf16.mxu0 0
    %134 = vmatpush1.bf16.msra.mxu0 %v114
    %135 = vmatprep.subr.bf16.mxu0 0
    %136 = vmatpush1.bf16.msra.mxu0 %v113
    %137 = vmatprep.subr.bf16.mxu0 0
    %138 = vmatpush2.bf16.msra.mxu0 0
    %139 = vmatprep.subr.bf16.mxu0 0
    %140 = vmatpush2.bf16.msra.mxu0 0
    %141 = vmatprep.subr.bf16.mxu0 0
    %142 = vmatpush2.bf16.msra.mxu0 0
    %143 = vmatprep.subr.bf16.mxu0 0
    %144 = vmatpush2.bf16.msra.mxu0 0
    %145 = vmatprep.subr.bf16.mxu0 0
    %146 = vmatpush2.bf16.msra.mxu0 0
    %147 = vmatprep.subr.bf16.mxu0 0
    %148 = vmatpush2.bf16.msra.mxu0 0
    %149 = vmatprep.subr.bf16.mxu0 0
    %150 = vmatpush2.bf16.msra.mxu0 0
    %151 = vmatprep.subr.bf16.mxu0 0
    %152 = vmatpush2.bf16.msra.mxu0 0
    %153 = vmatprep.mubr.bf16.mxu0 0
    %154 = vmatmul.mubr.bf16.gmra.mxu0 %v119
    %v155 = vpop.f32.mrf.mxu0
    %v156 = vadd.f32 %v103, %v155
    %v157 = vpop.f32.mrf.mxu0
    %v158 = vpop.f32.mrf.mxu0
    %v159 = vadd.f32 %v103, %v158
    %v160 = vpop.f32.mrf.mxu0
    %161 = vdwg.mxu0
    %v162 = vmax.f32 %v156, 0.0
    %v163 = vmax.f32 %v159, 0.0
    %v164 = vpack.c.bf16 %v163, %v162
    %v165 = vld [vmem:[%s5] sm:$0xf]
    %v166 = vld [vmem:[%s5 + $0x4] sm:$0xf]
    %v167 = vld [vmem:[%s5 + $0x8] sm:$0xf]
    %v168 = vld [vmem:[%s5 + $0xc] sm:$0xf]
    %v169 = vld [vmem:[%s6] sm:$0x1]
    %v171 = vlaneseq
    %v172 = vshrl.u32 %v171, 7
    %v173 = vsub.s32 0, %v172
    %v174 = vrot.slane %v169, %v173
    %v180 = vunpack.c.l.b16 %v165
    %v181 = vunpack.c.l.b16 %v166
    %v182 = vunpack.c.l.b16 %v167
    %v183 = vunpack.c.l.b16 %v168
    %v184 = vpack.c.b16 %v181, %v180
    %v185 = vpack.c.b16 %v183, %v182
    %v189 = vsel %vm117, %v164, 0
    %191 = vmatprep.subr.bf16.mxu0 0
    %192 = vmatpush1.bf16.msra.mxu0 0
    %193 = vmatprep.subr.bf16.mxu0 0
    %194 = vmatpush1.bf16.msra.mxu0 0
    %195 = vmatprep.subr.bf16.mxu0 0
    %196 = vmatpush1.bf16.msra.mxu0 0
    %197 = vmatprep.subr.bf16.mxu0 0
    %198 = vmatpush1.bf16.msra.mxu0 0
    %199 = vmatprep.subr.bf16.mxu0 0
    %200 = vmatpush1.bf16.msra.mxu0 0
    %201 = vmatprep.subr.bf16.mxu0 0
    %202 = vmatpush1.bf16.msra.mxu0 0
    %203 = vmatprep.subr.bf16.mxu0 0
    %204 = vmatpush1.bf16.msra.mxu0 %v185
    %205 = vmatprep.subr.bf16.mxu0 0
    %206 = vmatpush1.bf16.msra.mxu0 %v184
    %207 = vmatprep.subr.bf16.mxu0 0
    %208 = vmatpush2.bf16.msra.mxu0 0
    %209 = vmatprep.subr.bf16.mxu0 0
    %210 = vmatpush2.bf16.msra.mxu0 0
    %211 = vmatprep.subr.bf16.mxu0 0
    %212 = vmatpush2.bf16.msra.mxu0 0
    %213 = vmatprep.subr.bf16.mxu0 0
    %214 = vmatpush2.bf16.msra.mxu0 0
    %215 = vmatprep.subr.bf16.mxu0 0
    %216 = vmatpush2.bf16.msra.mxu0 0
    %217 = vmatprep.subr.bf16.mxu0 0
    %218 = vmatpush2.bf16.msra.mxu0 0
    %219 = vmatprep.subr.bf16.mxu0 0
    %220 = vmatpush2.bf16.msra.mxu0 0
    %221 = vmatprep.subr.bf16.mxu0 0
    %222 = vmatpush2.bf16.msra.mxu0 0
    %223 = vmatprep.mubr.bf16.mxu0 0
    %224 = vmatmul.mubr.bf16.gmra.mxu0 %v189
    %v225 = vpop.f32.mrf.mxu0
    %v226 = vadd.f32 %v174, %v225
    %v227 = vpop.f32.mrf.mxu0
    %v228 = vpop.f32.mrf.mxu0
    %v229 = vadd.f32 %v174, %v228
    %v230 = vpop.f32.mrf.mxu0
    %231 = vdwg.mxu0
    %vm232 = vcmask 64512
    %233 = vst.msk [vmem:[#allocation2] sm:$0xff] %vm232, %v226
    %234 = vst.msk [vmem:[#allocation2 + $0x8] sm:$0xff] %vm232, %v229
    // Predicated region
    $region30: #{mlp_forward.1} parent=1 // pred_check
      _
    $region31: #{mlp_forward.1} parent=1 // pred_check_branch
      %236 = sbr.rel (0) target = $region33
    $region32: #{mlp_forward.1} parent=1 // pred_region
      %s238 = ssub.s32 256, 256
      %239 = vsyncadd [#allocation3], %s238
      %s240 = sshll.u32 [#allocation2], 4
      %s241 = int_to_ptr.vmem [resolvable:$true] %s240
      %246 = dma.vmem_to_hbm [thread:$0]  %s241, 256, %s7, [#allocation3], 128, 128, 8
    $region33: #{mlp_forward.1} parent=1 // pred_fallthru
      _
    // Predicated region
    $region34: #{mlp_forward.1} parent=1 // pred_check
      _
    $region35: #{mlp_forward.1} parent=1 // pred_check_branch
      %248 = sbr.rel (0) target = $region37
    $region36: #{mlp_forward.1} parent=1 // pred_region
      %249 = dma.done [#allocation3], 256
    $region37: #{mlp_forward.1} parent=1 // pred_fallthru
      _
    %250 = vsyncpa [#allocation3], 1

</llo_original>
